<compile_context>
chip_gen: v6e
topology: v6e:2x2x1
jax: 0.10.0
libtpu: 0.0.40
codegen_flags: <defaults>
</compile_context>

<pallas_src>
import jax
import jax.numpy as jnp
from jax import lax
from jax.experimental import pallas as pl
from jax.experimental.pallas import tpu as pltpu

BN_EPS = 1e-5

# Whole-batch-resident cutoff (n * F elements).  4 MiB of f32 x; in-kernel
# temporaries (centered, centered^2) and the output keep peak VMEM < ~20 MiB,
# safe under v7x's 32 MiB default scoped limit / 64 MiB physical.
_RESIDENT_MAX_ELEMS = 1 << 20

# Row tile for the huge-N gridded path: 8192 rows * 128 B/row = 1 MiB of x
# per step (f32, F=32).  ~3 MiB of VMEM per step with double buffering.
_GRID_TILE_N = 8192

_VMEM_LIMIT_RESIDENT = 40 * 1024 * 1024   # explicit; < v7x 64 MiB physical
_VMEM_LIMIT_GRID = 32 * 1024 * 1024


# ---------------------------------------------------------------------------
# Kernel 1: whole batch resident in VMEM.  BN stats computed in-kernel so x
# is read from HBM exactly once.  gamma is pre-folded into w_ref, beta into
# b_ref (outside); 1/sqrt(var+eps) is folded into the (OUT, F) weight inside
# the kernel so there is a single big elementwise pass (x - mean) and no
# full-size x_hat temporary.
# ---------------------------------------------------------------------------
def _head_resident_kernel(x_ref, w_ref, b_ref, o_ref):
    x = x_ref[...].astype(jnp.float32)                          # (N, F)
    mean = jnp.mean(x, axis=0, keepdims=True)                   # (1, F)
    centered = x - mean                                         # (N, F)
    var = jnp.mean(centered * centered, axis=0, keepdims=True)  # biased, (1,F)
    inv_std = lax.rsqrt(var + BN_EPS)                           # (1, F)

    # Fold the per-feature scale into the tiny (OUT, F) weight instead of
    # into the big (N, F) activation.
    w_s = w_ref[...].astype(jnp.float32) * inv_std              # (OUT, F)

    # centered @ w_s^T  (contract last dims; no transpose materialized).
    y = lax.dot_general(
        centered, w_s,
        dimension_numbers=(((1,), (1,)), ((), ())),
        preferred_element_type=jnp.float32)                     # (N, OUT)
    o_ref[...] = (y + b_ref[...]).astype(o_ref.dtype)


# ---------------------------------------------------------------------------
# Kernel 2: gridded over row tiles for huge N.  BN stats + gamma/beta were
# folded into w_ref / b_ref in the wrapper, so each tile is matmul + bias.
# x stays in its native dtype (bf16 feeds the MXU directly); accumulate f32.
# ---------------------------------------------------------------------------
def _head_tile_kernel(x_ref, w_ref, b_ref, o_ref):
    y = lax.dot_general(
        x_ref[...].astype(w_ref.dtype), w_ref[...],
        dimension_numbers=(((1,), (1,)), ((), ())),
        preferred_element_type=jnp.float32)                     # (TILE_N, OUT)
    o_ref[...] = (y + b_ref[...]).astype(o_ref.dtype)


def custom_head(x, gamma, beta, weight, bias, *,
                max_resident_elems=_RESIDENT_MAX_ELEMS,
                grid_tile_n=_GRID_TILE_N):
    """x: (N, F); gamma/beta: (F,); weight: (OUT, F); bias: (OUT,). -> (N, OUT)."""
    n, f = x.shape
    out = weight.shape[0]

    gamma32 = gamma.astype(jnp.float32)
    beta32 = beta.astype(jnp.float32)
    w32 = weight.astype(jnp.float32)
    b32 = bias.astype(jnp.float32)
    hi = jax.lax.Precision.HIGHEST  # tiny (OUT,F)@(F,) folds: keep full f32

    if n * f <= max_resident_elems:
        # ---- whole batch resident: single HBM pass over x, stats in-kernel.
        # Fold the BN affine into the Linear:
        #   (g*x_hat + beta) @ W^T + b = x_hat @ (W*g)^T + (W @ beta + b)
        w_g = w32 * gamma32[None, :]                              # (OUT, F)
        b_g = (jnp.dot(w32, beta32, precision=hi) + b32).reshape(1, out)

        vmem = pl.BlockSpec(memory_space=pltpu.MemorySpace.VMEM)
        return pl.pallas_call(
            _head_resident_kernel,
            out_shape=jax.ShapeDtypeStruct((n, out), x.dtype),
            in_specs=[vmem, vmem, vmem],
            out_specs=vmem,
            compiler_params=pltpu.CompilerParams(
                vmem_limit_bytes=_VMEM_LIMIT_RESIDENT),
        )(x, w_g, b_g)

    # ---- huge batch: one fused XLA pass for stats (sum + sum-of-squares over
    # the same read of x; XLA fuses sibling reductions), then a gridded pure
    # matmul+bias kernel.  Total: 2 HBM passes over x.
    inv_n = jnp.float32(1.0 / n)
    s1 = jnp.sum(x, axis=0, dtype=jnp.float32)                    # (F,)
    s2 = jnp.sum(jnp.square(x.astype(jnp.float32)), axis=0)       # (F,)
    mean = s1 * inv_n
    # E[x^2] - mean^2 can cancel catastrophically for huge-magnitude inputs;
    # clamp at 0 (BatchNorm inputs are activations, typically O(1)).
    var = jnp.maximum(s2 * inv_n - mean * mean, 0.0)
    scale = gamma32 * lax.rsqrt(var + BN_EPS)                     # (F,)
    shift = beta32 - mean * scale                                 # (F,)

    # y = (x*scale + shift) @ W^T + b = x @ (W*scale)^T + (W @ shift + b)
    w_eff = w32 * scale[None, :]                                  # (OUT, F)
    b_eff = (jnp.dot(w32, shift, precision=hi) + b32).reshape(1, out)

    # Stream x in its native dtype (bf16 halves the HBM read); match w_eff.
    compute_dtype = x.dtype if x.dtype == jnp.bfloat16 else jnp.float32
    w_eff = w_eff.astype(compute_dtype)

    tile_n = n if n <= grid_tile_n else grid_tile_n
    grid = (pl.cdiv(n, tile_n),)
    return pl.pallas_call(
        _head_tile_kernel,
        out_shape=jax.ShapeDtypeStruct((n, out), x.dtype),
        grid=grid,
        in_specs=[
            pl.BlockSpec((tile_n, f), lambda i: (i, 0)),
            pl.BlockSpec((out, f), lambda i: (0, 0)),
            pl.BlockSpec((1, out), lambda i: (0, 0)),
        ],
        out_specs=pl.BlockSpec((tile_n, out), lambda i: (i, 0)),
        compiler_params=pltpu.CompilerParams(
            dimension_semantics=("parallel",),
            vmem_limit_bytes=_VMEM_LIMIT_GRID),
    )(x, w_eff, b_eff)


def reference(x, gamma, beta, weight, bias):
    x = x.astype(jnp.float32)
    mean = jnp.mean(x, axis=0, keepdims=True)
    var = jnp.mean((x - mean) ** 2, axis=0, keepdims=True)
    x_hat = (x - mean) / jnp.sqrt(var + BN_EPS) * gamma + beta
    return jnp.dot(x_hat, weight.T, precision=jax.lax.Precision.HIGHEST) + bias


if __name__ == "__main__":
    F, OUT = 32, 16   # num_features, parameters.classifier.block2.output

    key = jax.random.PRNGKey(0)
    kx, kw, kb, kg, kbe, kx2 = jax.random.split(key, 6)

    # Non-trivial BN affine params to exercise the gamma/beta folding.
    gamma = 1.0 + 0.1 * jax.random.normal(kg, (F,), dtype=jnp.float32)
    beta = 0.1 * jax.random.normal(kbe, (F,), dtype=jnp.float32)

    bound = 1.0 / (F ** 0.5)
    weight = jax.random.uniform(kw, (OUT, F), minval=-bound, maxval=bound,
                                dtype=jnp.float32)
    bias = jax.random.uniform(kb, (OUT,), minval=-bound, maxval=bound,
                              dtype=jnp.float32)

    # --- production-like small batch: whole-batch-resident path, stats in-kernel
    N = 8
    x = jax.random.normal(kx, (N, F), dtype=jnp.float32)
    y = jax.block_until_ready(custom_head(x, gamma, beta, weight, bias))
    y_ref = reference(x, gamma, beta, weight, bias)
    assert y.shape == (N, OUT)
    assert jnp.allclose(y, y_ref, atol=2e-3, rtol=2e-3), "resident-path mismatch"

    # --- gridded huge-N path, forced at a small test shape by overriding the
    #     resident budget / tile so it runs 4 parallel grid steps.
    N2 = 4096
    x2 = jax.random.normal(kx2, (N2, F), dtype=jnp.float32)
    y2 = jax.block_until_ready(
        custom_head(x2, gamma, beta, weight, bias,
                    max_resident_elems=0, grid_tile_n=1024))
    y2_ref = reference(x2, gamma, beta, weight, bias)
    assert y2.shape == (N2, OUT)
    assert jnp.allclose(y2, y2_ref, atol=2e-3, rtol=2e-3), "grid-path mismatch"

    print("KERNEL_OK")
</pallas_src>

<mosaic_0001>
module attributes {stable_mosaic.version = 11 : i64} {
  func.func @_head_resident_kernel(%arg0: memref<8x32xf32, #tpu.memory_space<vmem>>, %arg1: memref<16x32xf32, #tpu.memory_space<vmem>>, %arg2: memref<1x16xf32, #tpu.memory_space<vmem>>, %arg3: memref<8x16xf32, #tpu.memory_space<vmem>>) attributes {dimension_semantics = [], scalar_prefetch = 0 : i64, scratch_operands = 0 : i64, tpu.core_type = #tpu.core_type<tc>} {
    %c0 = arith.constant 0 : index
    %c0_0 = arith.constant 0 : index
    %0 = vector.load %arg0[%c0, %c0_0] : memref<8x32xf32, #tpu.memory_space<vmem>>, vector<8x32xf32>
    %cst = arith.constant dense<0.000000e+00> : vector<32xf32>
    %1 = vector.multi_reduction <add>, %0, %cst [0] : vector<8x32xf32> to vector<32xf32>
    %2 = vector.shape_cast %1 : vector<32xf32> to vector<1x32xf32>
    %cst_1 = arith.constant 8.000000e+00 : f32
    %3 = vector.broadcast %cst_1 : f32 to vector<1x32xf32>
    %4 = arith.divf %2, %3 : vector<1x32xf32>
    %5 = vector.broadcast %4 : vector<1x32xf32> to vector<8x32xf32>
    %6 = arith.subf %0, %5 : vector<8x32xf32>
    %7 = arith.mulf %6, %6 : vector<8x32xf32>
    %cst_2 = arith.constant dense<0.000000e+00> : vector<32xf32>
    %8 = vector.multi_reduction <add>, %7, %cst_2 [0] : vector<8x32xf32> to vector<32xf32>
    %9 = vector.shape_cast %8 : vector<32xf32> to vector<1x32xf32>
    %cst_3 = arith.constant 8.000000e+00 : f32
    %10 = vector.broadcast %cst_3 : f32 to vector<1x32xf32>
    %11 = arith.divf %9, %10 : vector<1x32xf32>
    %cst_4 = arith.constant 9.99999974E-6 : f32
    %12 = vector.broadcast %cst_4 : f32 to vector<1x32xf32>
    %13 = arith.addf %11, %12 : vector<1x32xf32>
    %14 = math.rsqrt %13 : vector<1x32xf32>
    %c0_5 = arith.constant 0 : index
    %c0_6 = arith.constant 0 : index
    %15 = vector.load %arg1[%c0_5, %c0_6] : memref<16x32xf32, #tpu.memory_space<vmem>>, vector<16x32xf32>
    %16 = vector.broadcast %14 : vector<1x32xf32> to vector<16x32xf32>
    %17 = arith.mulf %15, %16 : vector<16x32xf32>
    %cst_7 = arith.constant dense<0.000000e+00> : vector<8x16xf32>
    %18 = tpu.matmul %6, %17, %cst_7 {dimension_numbers = #tpu.dot_dimension_numbers<[1], [1], [0], [0], [0, 0, 1, 0], [], []>} : vector<8x32xf32>, vector<16x32xf32>, vector<8x16xf32> -> vector<8x16xf32>
    %c0_8 = arith.constant 0 : index
    %c0_9 = arith.constant 0 : index
    %19 = vector.load %arg2[%c0_8, %c0_9] : memref<1x16xf32, #tpu.memory_space<vmem>>, vector<1x16xf32>
    %20 = vector.broadcast %19 : vector<1x16xf32> to vector<8x16xf32>
    %21 = arith.addf %18, %20 : vector<8x16xf32>
    %c0_10 = arith.constant 0 : index
    %c0_11 = arith.constant 0 : index
    %22 = vector.load %arg3[%c0_10, %c0_11] : memref<8x16xf32, #tpu.memory_space<vmem>>, vector<8x16xf32>
    tpu.vector_store %arg3[%c0_10, %c0_11], %21 {strides = array<i32>} : memref<8x16xf32, #tpu.memory_space<vmem>>, vector<8x16xf32>,
    return
  }
}

</mosaic_0001>

<llo_original>
// kernel: tpu_custom_call.1
$region0: #{tpu_custom_call.1}
  #allocation0 [shape = 'u32[]', space=smem, size = 0x4, offset = 0x4, fixed_abs, tag = 'smem constant byte address 0x4 - core index']
  #allocation1 [shape = 'u32[144,128]{1,0:T(1,128)}', space=vmem, size = 0x12000, scoped, tag = 'internal scratch']
  %s0 = inlined_call_operand.hbm [shape: f32[8,32], index: 0, kind: input, shape index: {}]
  %s1 = inlined_call_operand.hbm [shape: f32[16,32], index: 1, kind: input, shape index: {}]
  %s2 = inlined_call_operand.vmem [shape: f32[1,16], index: 2, kind: input, shape index: {}]
  %s3 = inlined_call_operand.hbm [shape: f32[8,16], index: 3, kind: output, shape index: {}]
  %s4 = sld [smem:[#allocation0]]
  $region30: #{tpu_custom_call.1} parent=0
    _
  %s6 = ssub.s32 1, %s4
  %s7 = scalar_select 0, %s6, %s4
  $region1: #{tpu_custom_call.1} parent=0
    #allocation2 [shape = 'u8[4096]{0}', space=vmem, size = 0x1000, scoped, tag = 'input window, operand 0, single buffered']
    #allocation3 [shape = 's32[1]{0}', space=sflag, size = 0x4, scoped, tag = 'scoped memory for tpu_custom_call.1']
    #allocation4 [shape = 's32[1]{0}', space=sflag, size = 0x4, scoped, tag = 'scoped memory for tpu_custom_call.1']
    #allocation5 [shape = 'u8[8192]{0}', space=vmem, size = 0x2000, scoped, tag = 'input window, operand 1, single buffered']
    #allocation6 [shape = 's32[1]{0}', space=sflag, size = 0x4, scoped, tag = 'scoped memory for tpu_custom_call.1']
    #allocation7 [shape = 'u8[4096]{0}', space=vmem, size = 0x1000, scoped, tag = 'output window, operand 0, single buffered']
    %8 = vsyncpa [#allocation3], 0
    %9 = vsyncpa [#allocation6], 0
    %10 = vsyncpa [#allocation4], 0
    // Predicated region
    $region2: #{tpu_custom_call.1} parent=1 // pred_check
      _
    $region3: #{tpu_custom_call.1} parent=1 // pred_check_branch
      %12 = sbr.rel (0) target = $region5
    $region4: #{tpu_custom_call.1} parent=1 // pred_region
      %s14 = ssub.s32 128, 128
      %15 = vsyncadd [#allocation3], %s14
      %s17 = sshll.u32 [#allocation2], 4
      %s18 = int_to_ptr.vmem [resolvable:$true] %s17
      %20 = dma.hbm_to_vmem [thread:$0]  %s0, 128, %s18, [#allocation3]
    $region5: #{tpu_custom_call.1} parent=1 // pred_fallthru
      _
    // Predicated region
    $region6: #{tpu_custom_call.1} parent=1 // pred_check
      _
    $region7: #{tpu_custom_call.1} parent=1 // pred_check_branch
      %22 = sbr.rel (0) target = $region9
    $region8: #{tpu_custom_call.1} parent=1 // pred_region
      %s24 = ssub.s32 256, 256
      %25 = vsyncadd [#allocation6], %s24
      %s26 = sshll.u32 [#allocation5], 4
      %s27 = int_to_ptr.vmem [resolvable:$true] %s26
      %32 = dma.hbm_to_vmem [thread:$0]  %s1, 256, %s27, [#allocation6], 128, 128, 8
    $region9: #{tpu_custom_call.1} parent=1 // pred_fallthru
      _
    // Predicated region
    $region10: #{tpu_custom_call.1} parent=1 // pred_check
      _
    $region11: #{tpu_custom_call.1} parent=1 // pred_check_branch
      %34 = sbr.rel (0) target = $region13
    $region12: #{tpu_custom_call.1} parent=1 // pred_region
      _
    $region13: #{tpu_custom_call.1} parent=1 // pred_fallthru
      _
    // Predicated region
    $region14: #{tpu_custom_call.1} parent=1 // pred_check
      _
    $region15: #{tpu_custom_call.1} parent=1 // pred_check_branch
      %36 = sbr.rel (0) target = $region17
    $region16: #{tpu_custom_call.1} parent=1 // pred_region
      %37 = dma.done [#allocation3], 128
    $region17: #{tpu_custom_call.1} parent=1 // pred_fallthru
      _
    // Predicated region
    $region18: #{tpu_custom_call.1} parent=1 // pred_check
      _
    $region19: #{tpu_custom_call.1} parent=1 // pred_check_branch
      %39 = sbr.rel (0) target = $region21
    $region20: #{tpu_custom_call.1} parent=1 // pred_region
      %40 = dma.done [#allocation6], 256
    $region21: #{tpu_custom_call.1} parent=1 // pred_fallthru
      _
    %v41 = vld [vmem:[#allocation2] sm:$0xff]
    %vm42 = vcmask 261120
    %v43 = vsel %vm42, %v41, 0.0
    %v44 = vrot.slane %v43, 4
    %v45 = vadd.f32 %v43, %v44
    %v46 = vrot.slane %v45, 2
    %v47 = vadd.f32 %v45, %v46
    %v48 = vrot.slane %v47, 1
    %v49 = vadd.f32 %v47, %v48
    %v50 = vrcp.pop 8.0
    %v51 = vmul.f32 %v49, %v50
    %v52 = vsub.f32 %v41, %v51
    %v53 = vmul.f32 %v52, %v52
    %v54 = vsel %vm42, %v53, 0.0
    %v55 = vrot.slane %v54, 4
    %v56 = vadd.f32 %v54, %v55
    %v57 = vrot.slane %v56, 2
    %v58 = vadd.f32 %v56, %v57
    %v59 = vrot.slane %v58, 1
    %v60 = vadd.f32 %v58, %v59
    %v61 = vmul.f32 %v60, %v50
    %v62 = vadd.f32 %v61, 1e-05
    %v63 = vrsqrt.pop %v62
    %v64 = vld [vmem:[#allocation5] sm:$0xff]
    %v65 = vld [vmem:[#allocation5 + $0x8] sm:$0xff]
    %v66 = vmul.f32 %v64, %v63
    %v67 = vmul.f32 %v65, %v63
    %v68 = vld [vmem:[%s2] sm:$0x1]
    %v70 = vlaneseq
    %v71 = vshrl.u32 %v70, 7
    %v72 = vsub.s32 0, %v71
    %v73 = vrot.slane %v68, %v72
    %v76 = vsel %vm42, %v52, 0
    %v79 = vsel %vm42, %v66, 0
    %v82 = vsel %vm42, %v67, 0
    %84 = vmatprep.subr.mxu0 0.0
    %85 = vmatpush1.xpose.msra.mxu0 0.0
    %86 = vmatprep.subr.mxu0 0.0
    %87 = vmatpush1.xpose.msra.mxu0 0.0
    %88 = vmatprep.subr.mxu0 0.0
    %89 = vmatpush1.xpose.msra.mxu0 0.0
    %90 = vmatprep.subr.mxu0 0.0
    %91 = vmatpush1.xpose.msra.mxu0 0.0
    %92 = vmatprep.subr.mxu0 0.0
    %93 = vmatpush1.xpose.msra.mxu0 0.0
    %94 = vmatprep.subr.mxu0 0.0
    %95 = vmatpush1.xpose.msra.mxu0 0.0
    %96 = vmatprep.subr.mxu0 0.0
    %97 = vmatpush1.xpose.msra.mxu0 0.0
    %98 = vmatprep.subr.mxu0 0.0
    %99 = vmatpush1.xpose.msra.mxu0 0.0
    %100 = vmatprep.subr.mxu0 0.0
    %101 = vmatpush1.xpose.msra.mxu0 0.0
    %102 = vmatprep.subr.mxu0 0.0
    %103 = vmatpush1.xpose.msra.mxu0 0.0
    %104 = vmatprep.subr.mxu0 0.0
    %105 = vmatpush1.xpose.msra.mxu0 0.0
    %106 = vmatprep.subr.mxu0 0.0
    %107 = vmatpush1.xpose.msra.mxu0 0.0
    %108 = vmatprep.subr.mxu0 0.0
    %109 = vmatpush1.xpose.msra.mxu0 0.0
    %110 = vmatprep.subr.mxu0 0.0
    %111 = vmatpush1.xpose.msra.mxu0 0.0
    %112 = vmatprep.subr.mxu0 0.0
    %113 = vmatpush1.xpose.msra.mxu0 %v82
    %114 = vmatprep.subr.mxu0 0.0
    %115 = vmatpush1.xpose.msra.mxu0 %v79
    %116 = vmatprep.subr.mxu0 0.0
    %117 = vmatpush2.xpose.msra.mxu0 0.0
    %118 = vmatprep.subr.mxu0 0.0
    %119 = vmatpush2.xpose.msra.mxu0 0.0
    %120 = vmatprep.subr.mxu0 0.0
    %121 = vmatpush2.xpose.msra.mxu0 0.0
    %122 = vmatprep.subr.mxu0 0.0
    %123 = vmatpush2.xpose.msra.mxu0 0.0
    %124 = vmatprep.subr.mxu0 0.0
    %125 = vmatpush2.xpose.msra.mxu0 0.0
    %126 = vmatprep.subr.mxu0 0.0
    %127 = vmatpush2.xpose.msra.mxu0 0.0
    %128 = vmatprep.subr.mxu0 0.0
    %129 = vmatpush2.xpose.msra.mxu0 0.0
    %130 = vmatprep.subr.mxu0 0.0
    %131 = vmatpush2.xpose.msra.mxu0 0.0
    %132 = vmatprep.subr.mxu0 0.0
    %133 = vmatpush2.xpose.msra.mxu0 0.0
    %134 = vmatprep.subr.mxu0 0.0
    %135 = vmatpush2.xpose.msra.mxu0 0.0
    %136 = vmatprep.subr.mxu0 0.0
    %137 = vmatpush2.xpose.msra.mxu0 0.0
    %138 = vmatprep.subr.mxu0 0.0
    %139 = vmatpush2.xpose.msra.mxu0 0.0
    %140 = vmatprep.subr.mxu0 0.0
    %141 = vmatpush2.xpose.msra.mxu0 0.0
    %142 = vmatprep.subr.mxu0 0.0
    %143 = vmatpush2.xpose.msra.mxu0 0.0
    %144 = vmatprep.subr.mxu0 0.0
    %145 = vmatpush2.xpose.msra.mxu0 0.0
    %146 = vmatprep.subr.mxu0 0.0
    %147 = vmatpush2.xpose.msra.mxu0 0.0
    %148 = vmatprep.mubr.f32.mxu0 0.0
    %149 = vmatmul.mubr.f32.gmra.mxu0 %v76
    %v150 = vpop.f32.mrf.mxu0
    %v151 = vadd.f32 %v73, %v150
    %v152 = vpop.f32.mrf.mxu0
    %153 = vdwg.mxu0
    %vm154 = vcmask 130048
    %155 = vst.msk [vmem:[#allocation7] sm:$0xff] %vm154, %v151
    // Predicated region
    $region22: #{tpu_custom_call.1} parent=1 // pred_check
      _
    $region23: #{tpu_custom_call.1} parent=1 // pred_check_branch
      %157 = sbr.rel (0) target = $region25
    $region24: #{tpu_custom_call.1} parent=1 // pred_region
      %s159 = ssub.s32 128, 128
      %160 = vsyncadd [#allocation4], %s159
      %s162 = sshll.u32 [#allocation7], 4
      %s163 = int_to_ptr.vmem [resolvable:$true] %s162
      %165 = dma.vmem_to_hbm [thread:$0]  %s163, 128, %s3, [#allocation4]
    $region25: #{tpu_custom_call.1} parent=1 // pred_fallthru
      _
    // Predicated region
    $region26: #{tpu_custom_call.1} parent=1 // pred_check
      _
    $region27: #{tpu_custom_call.1} parent=1 // pred_check_branch
      %167 = sbr.rel (0) target = $region29
    $region28: #{tpu_custom_call.1} parent=1 // pred_region
      %168 = dma.done [#allocation4], 128
    $region29: #{tpu_custom_call.1} parent=1 // pred_fallthru
      _
    %169 = vsyncpa [#allocation3], 1
    %170 = vsyncpa [#allocation6], 1
    %171 = vsyncpa [#allocation4], 1

</llo_original>
